<compile_context>
chip_gen: v6e
topology: v6e:2x2x1
jax: 0.10.0
libtpu: 0.0.40
codegen_flags: <defaults>
</compile_context>

<pallas_src>
import jax
import jax.numpy as jnp
from jax.experimental import pallas as pl
from jax.experimental.pallas import tpu as pltpu


def _round_up(x, m):
    return (x + m - 1) // m * m


def _vq_kernel(e_kd_ref, e_dk_ref, e_sq_ref, z_ref, idx_ref, zq_ref):
    """One (batch, spatial-tile) grid step.

    e_kd_ref : (Kp, D)    f32  codebook (row-major), grid-invariant
    e_dk_ref : (D, Kp)    f32  codebook pre-transposed, grid-invariant
    e_sq_ref : (Kp, 1)    f32  precomputed ||e_k||^2 (1e30 on pad rows)
    z_ref    : (1, D, TN) f32  spatial tile of z in native NCHW layout
    idx_ref  : (1, 1, TN) i32  argmin codebook index per spatial position
    zq_ref   : (1, D, TN) f32  quantized vectors (gathered codebook rows)
    """
    z = z_ref[0]                                                  # (D, TN)
    e_kd = e_kd_ref[...]                                          # (Kp, D)

    # Distance up to a z-only constant: ||e||^2 - 2 e.z  (the ||z||^2 term is
    # constant along the argmin axis, so it is dropped entirely).
    dots = jnp.dot(e_kd, z, preferred_element_type=jnp.float32)   # (Kp, TN) MXU
    dist = e_sq_ref[...] - 2.0 * dots                             # (Kp, TN)

    # First-minimum argmin over the codebook axis (same tie-break as torch).
    kp, tn = dist.shape
    min_d = jnp.min(dist, axis=0, keepdims=True)                  # (1, TN)
    row = jax.lax.broadcasted_iota(jnp.int32, (kp, tn), 0)        # (Kp, TN)
    cand = jnp.where(dist == min_d, row, jnp.int32(kp))
    idx = jnp.min(cand, axis=0, keepdims=True)                    # (1, TN) i32
    idx_ref[0] = idx

    # Gather codebook rows via one-hot matmul (exact for f32, MXU-friendly,
    # lane-dense output since TN is the last dim).
    onehot = (row == idx).astype(jnp.float32)                     # (Kp, TN)
    zq_ref[0] = jnp.dot(e_dk_ref[...], onehot,
                        preferred_element_type=jnp.float32)       # (D, TN)


@jax.jit
def vq_forward(z, embedding):
    """VQ.forward(z) with ema=False / eval mode.

    z         : (B, D, H, W) float32   (NCHW, like the PyTorch module)
    embedding : (K, D) float32         codebook weights
    returns   : (encoding_indices (B,1,H,W) int32, z_q (B,D,H,W) float32)
    """
    B, D, H, W = z.shape
    K = embedding.shape[0]
    HW = H * W

    # ---- codebook prep (one-time, grid-invariant, hoisted out of kernel) ---
    e = embedding.astype(jnp.float32)
    Kp = _round_up(max(K, 128), 128)
    e_kd = jnp.pad(e, ((0, Kp - K), (0, 0)))                      # (Kp, D)
    e_dk = e_kd.T                                                  # (D, Kp)
    e_sq = jnp.pad(jnp.sum(e * e, axis=1), (0, Kp - K),
                   constant_values=1e30)[:, None]                  # (Kp, 1)
    # TODO(synk): for very large codebooks (K >~ 1024) chunk K inside the
    # kernel with a running (min, argmin) carry instead of a full (Kp, TN)
    # distance tile.

    # ---- spatial tiling: tile H*W directly in NCHW layout (no transposes) --
    LANE = 128
    if HW % LANE == 0:
        TN = next(t for t in (1024, 512, 256, 128) if HW % t == 0)
        HWp = HW
    else:
        TN = min(1024, _round_up(HW, LANE))
        HWp = _round_up(HW, TN)

    z_flat = z.reshape(B, D, HW).astype(jnp.float32)
    if HWp != HW:
        z_flat = jnp.pad(z_flat, ((0, 0), (0, 0), (0, HWp - HW)))

    grid = (B, HWp // TN)

    idx_out, zq_out = pl.pallas_call(
        _vq_kernel,
        out_shape=(
            jax.ShapeDtypeStruct((B, 1, HWp), jnp.int32),
            jax.ShapeDtypeStruct((B, D, HWp), jnp.float32),
        ),
        grid_spec=pltpu.PrefetchScalarGridSpec(
            num_scalar_prefetch=0,
            grid=grid,
            in_specs=[
                pl.BlockSpec((Kp, D), lambda b, j: (0, 0)),        # codebook
                pl.BlockSpec((D, Kp), lambda b, j: (0, 0)),        # codebook^T
                pl.BlockSpec((Kp, 1), lambda b, j: (0, 0)),        # ||e||^2
                pl.BlockSpec((1, D, TN), lambda b, j: (b, 0, j)),  # z tile
            ],
            out_specs=(
                pl.BlockSpec((1, 1, TN), lambda b, j: (b, 0, j)),  # indices
                pl.BlockSpec((1, D, TN), lambda b, j: (b, 0, j)),  # z_q tile
            ),
        ),
        compiler_params=pltpu.CompilerParams(
            dimension_semantics=("parallel", "parallel"),
            vmem_limit_bytes=32 * 1024 * 1024,
        ),
    )(e_kd, e_dk, e_sq, z_flat)

    encoding_indices = idx_out[:, :, :HW].reshape(B, 1, H, W)
    z_q = zq_out[:, :, :HW].reshape(B, D, H, W)
    return encoding_indices, z_q


def init_codebook(key, n_embeddings, embedding_dim):
    # nn.init.kaiming_uniform_(weight, a=1):
    #   gain = sqrt(2/(1+a^2)) = 1, fan_in = embedding_dim,
    #   bound = gain * sqrt(3/fan_in)
    bound = jnp.sqrt(3.0 / embedding_dim)
    return jax.random.uniform(
        key, (n_embeddings, embedding_dim), jnp.float32, -bound, bound
    )


if __name__ == "__main__":
    # small shapes consistent with the module
    n_embeddings = 16
    embedding_dim = 32
    B, H, W = 2, 16, 16

    key = jax.random.PRNGKey(0)
    k_emb, k_z = jax.random.split(key)

    embedding = init_codebook(k_emb, n_embeddings, embedding_dim)
    z = jax.random.normal(k_z, (B, embedding_dim, H, W), jnp.float32)  # NCHW

    # TODO(synk): EMA codebook update path (training-only, torch.no_grad buffer
    # mutation) is not implemented; forward here corresponds to ema=False / eval.

    encoding_indices, z_q = vq_forward(z, embedding)
    jax.block_until_ready((encoding_indices, z_q))

    # sanity check against a pure-JAX reference of the original math
    flat_z = jnp.transpose(z, (0, 2, 3, 1)).reshape(-1, embedding_dim)
    dist_ref = (
        jnp.sum(flat_z**2, 1, keepdims=True)
        + jnp.sum(embedding**2, 1)
        - 2.0 * flat_z @ embedding.T
    )
    idx_ref = jnp.argmin(dist_ref, axis=1).reshape(B, 1, H, W).astype(jnp.int32)
    zq_ref = jnp.transpose(
        embedding[idx_ref.reshape(-1)].reshape(B, H, W, embedding_dim), (0, 3, 1, 2)
    )
    assert encoding_indices.shape == (B, 1, H, W)
    assert z_q.shape == (B, embedding_dim, H, W)
    assert bool(jnp.all(encoding_indices == idx_ref))
    assert bool(jnp.allclose(z_q, zq_ref, atol=1e-5))

    print("KERNEL_OK")
</pallas_src>

<mosaic_0001>
module attributes {stable_mosaic.version = 11 : i64} {
  func.func @_vq_kernel(%arg0: i32, %arg1: i32, %arg2: memref<128x32xf32, #tpu.memory_space<vmem>>, %arg3: memref<32x128xf32, #tpu.memory_space<vmem>>, %arg4: memref<128x1xf32, #tpu.memory_space<vmem>>, %arg5: memref<1x32x256xf32, #tpu.memory_space<vmem>>, %arg6: memref<1x1x256xi32, #tpu.memory_space<vmem>>, %arg7: memref<1x32x256xf32, #tpu.memory_space<vmem>>) attributes {dimension_semantics = [#tpu.dimension_semantics<parallel>, #tpu.dimension_semantics<parallel>], iteration_bounds = array<i64: 2, 1>, scalar_prefetch = 0 : i64, scratch_operands = 0 : i64, tpu.core_type = #tpu.core_type<tc>, window_params = [{pipeline_mode = #tpu.pipeline_mode<synchronous>, transform_indices = @transform_0, window_bounds = array<i64: 128, 32>}, {pipeline_mode = #tpu.pipeline_mode<synchronous>, transform_indices = @transform_1, window_bounds = array<i64: 32, 128>}, {pipeline_mode = #tpu.pipeline_mode<synchronous>, transform_indices = @transform_2, window_bounds = array<i64: 128, 1>}, {transform_indices = @transform_3, window_bounds = array<i64: 1, 32, 256>}, {transform_indices = @transform_4, window_bounds = array<i64: 1, 1, 256>}, {transform_indices = @transform_5, window_bounds = array<i64: 1, 32, 256>}]} {
    %c0 = arith.constant 0 : index
    %c0_0 = arith.constant 0 : index
    %c0_1 = arith.constant 0 : index
    %0 = vector.load %arg5[%c0, %c0_0, %c0_1] : memref<1x32x256xf32, #tpu.memory_space<vmem>>, vector<1x32x256xf32>
    %1 = vector.shape_cast %0 : vector<1x32x256xf32> to vector<32x256xf32>
    %c0_2 = arith.constant 0 : index
    %c0_3 = arith.constant 0 : index
    %2 = vector.load %arg2[%c0_2, %c0_3] : memref<128x32xf32, #tpu.memory_space<vmem>>, vector<128x32xf32>
    %cst = arith.constant dense<0.000000e+00> : vector<128x256xf32>
    %3 = tpu.matmul %2, %1, %cst {dimension_numbers = #tpu.dot_dimension_numbers<[1], [0], [0], [1], [0, 0, 1, 1], [], []>} : vector<128x32xf32>, vector<32x256xf32>, vector<128x256xf32> -> vector<128x256xf32>
    %c0_4 = arith.constant 0 : index
    %c0_5 = arith.constant 0 : index
    %4 = vector.load %arg4[%c0_4, %c0_5] : memref<128x1xf32, #tpu.memory_space<vmem>>, vector<128x1xf32>
    %cst_6 = arith.constant 2.000000e+00 : f32
    %5 = vector.broadcast %cst_6 : f32 to vector<128x256xf32>
    %6 = arith.mulf %5, %3 : vector<128x256xf32>
    %7 = vector.broadcast %4 : vector<128x1xf32> to vector<128x256xf32>
    %8 = arith.subf %7, %6 : vector<128x256xf32>
    %cst_7 = arith.constant dense<0x7F800000> : vector<256xf32>
    %9 = vector.multi_reduction <minimumf>, %8, %cst_7 [0] : vector<128x256xf32> to vector<256xf32>
    %10 = vector.shape_cast %9 : vector<256xf32> to vector<1x256xf32>
    %11 = tpu.iota {dimensions = array<i32: 0>} : vector<128x256xi32>
    %12 = vector.broadcast %10 : vector<1x256xf32> to vector<128x256xf32>
    %13 = arith.cmpf oeq, %8, %12 : vector<128x256xf32>
    %c128_i32 = arith.constant 128 : i32
    %14 = vector.broadcast %c128_i32 : i32 to vector<128x256xi32>
    %15 = arith.select %13, %11, %14 : vector<128x256xi1>, vector<128x256xi32>
    %cst_8 = arith.constant dense<2147483647> : vector<256xi32>
    %16 = vector.multi_reduction <minsi>, %15, %cst_8 [0] : vector<128x256xi32> to vector<256xi32>
    %17 = vector.shape_cast %16 : vector<256xi32> to vector<1x256xi32>
    %c0_9 = arith.constant 0 : index
    %c0_10 = arith.constant 0 : index
    %c0_11 = arith.constant 0 : index
    %18 = vector.load %arg6[%c0_9, %c0_10, %c0_11] : memref<1x1x256xi32, #tpu.memory_space<vmem>>, vector<1x1x256xi32>
    %19 = vector.shape_cast %18 : vector<1x1x256xi32> to vector<1x256xi32>
    %20 = vector.shape_cast %17 : vector<1x256xi32> to vector<1x1x256xi32>
    tpu.vector_store %arg6[%c0_9, %c0_10, %c0_11], %20 {strides = array<i32>} : memref<1x1x256xi32, #tpu.memory_space<vmem>>, vector<1x1x256xi32>,
    %21 = vector.broadcast %17 : vector<1x256xi32> to vector<128x256xi32>
    %22 = arith.cmpi eq, %11, %21 : vector<128x256xi32>
    %23 = arith.extui %22 : vector<128x256xi1> to vector<128x256xi32>
    %24 = arith.sitofp %23 : vector<128x256xi32> to vector<128x256xf32>
    %c0_12 = arith.constant 0 : index
    %c0_13 = arith.constant 0 : index
    %25 = vector.load %arg3[%c0_12, %c0_13] : memref<32x128xf32, #tpu.memory_space<vmem>>, vector<32x128xf32>
    %cst_14 = arith.constant dense<0.000000e+00> : vector<32x256xf32>
    %26 = tpu.matmul %25, %24, %cst_14 {dimension_numbers = #tpu.dot_dimension_numbers<[1], [0], [0], [1], [0, 0, 1, 1], [], []>} : vector<32x128xf32>, vector<128x256xf32>, vector<32x256xf32> -> vector<32x256xf32>
    %c0_15 = arith.constant 0 : index
    %c0_16 = arith.constant 0 : index
    %c0_17 = arith.constant 0 : index
    %27 = vector.load %arg7[%c0_15, %c0_16, %c0_17] : memref<1x32x256xf32, #tpu.memory_space<vmem>>, vector<1x32x256xf32>
    %28 = vector.shape_cast %27 : vector<1x32x256xf32> to vector<32x256xf32>
    %29 = vector.shape_cast %26 : vector<32x256xf32> to vector<1x32x256xf32>
    tpu.vector_store %arg7[%c0_15, %c0_16, %c0_17], %29 {strides = array<i32>} : memref<1x32x256xf32, #tpu.memory_space<vmem>>, vector<1x32x256xf32>,
    return
  }
  func.func @transform_0(%arg0: i32, %arg1: i32) -> (i32, i32) {
    %c0_i32 = arith.constant 0 : i32
    %c0_i32_0 = arith.constant 0 : i32
    %c0_i32_1 = arith.constant 0 : i32
    return %c0_i32, %c0_i32_0 : i32, i32
  }
  func.func @transform_1(%arg0: i32, %arg1: i32) -> (i32, i32) {
    %c0_i32 = arith.constant 0 : i32
    %c0_i32_0 = arith.constant 0 : i32
    %c0_i32_1 = arith.constant 0 : i32
    return %c0_i32, %c0_i32_0 : i32, i32
  }
  func.func @transform_2(%arg0: i32, %arg1: i32) -> (i32, i32) {
    %c0_i32 = arith.constant 0 : i32
    %c0_i32_0 = arith.constant 0 : i32
    %c0_i32_1 = arith.constant 0 : i32
    return %c0_i32, %c0_i32_0 : i32, i32
  }
  func.func @transform_3(%arg0: i32, %arg1: i32) -> (i32, i32, i32) {
    %c0_i32 = arith.constant 0 : i32
    %c0_i32_0 = arith.constant 0 : i32
    return %arg0, %c0_i32, %arg1 : i32, i32, i32
  }
  func.func @transform_4(%arg0: i32, %arg1: i32) -> (i32, i32, i32) {
    %c0_i32 = arith.constant 0 : i32
    %c0_i32_0 = arith.constant 0 : i32
    return %arg0, %c0_i32, %arg1 : i32, i32, i32
  }
  func.func @transform_5(%arg0: i32, %arg1: i32) -> (i32, i32, i32) {
    %c0_i32 = arith.constant 0 : i32
    %c0_i32_0 = arith.constant 0 : i32
    return %arg0, %c0_i32, %arg1 : i32, i32, i32
  }
}

</mosaic_0001>

<llo_original>
// kernel: vq_forward.1
$region0: #{vq_forward.1}
  #allocation0 [shape = 'u32[]', space=smem, size = 0x4, offset = 0x4, fixed_abs, tag = 'smem constant byte address 0x4 - core index']
  #allocation1 [shape = 'u32[144,128]{1,0:T(1,128)}', space=vmem, size = 0x12000, scoped, tag = 'internal scratch']
  %s0 = inlined_call_operand.vmem [shape: f32[128,32], index: 0, kind: input, shape index: {}]
  %s1 = inlined_call_operand.vmem [shape: f32[32,128], index: 1, kind: input, shape index: {}]
  %s2 = inlined_call_operand.vmem [shape: f32[128,1], index: 2, kind: input, shape index: {}]
  %s3 = inlined_call_operand.vmem [shape: f32[2,32,256], index: 3, kind: input, shape index: {}]
  %s4 = inlined_call_operand.vmem [shape: s32[2,1,256], index: 4, kind: output, shape index: {0}]
  %s5 = inlined_call_operand.vmem [shape: f32[2,32,256], index: 5, kind: output, shape index: {1}]
  %6 = xla_tuple %s4, %s5
  %s7 = sld [smem:[#allocation0]]
  $region57: #{vq_forward.1} parent=0
    _
  %s9 = ssub.s32 1, %s7
  %s10 = scalar_select 0, %s9, %s7
  loop: start=0, step=1, limit=4
  $region2: #{vq_forward.1} parent=0 // loop_pre_header
    _
  $region3: #{vq_forward.1} parent=0 // loop_header
    %s12 = sphi 0, %s16
    %p13 = scmp.ge.s32.totalorder %s12, 4
    %s19 = sphi 0, %s31
    %s20 = sphi 0, %s27
    %s21 = sphi 0, %s19
    %s22 = sphi 0, %s20
    %s23 = sphi 0, %s21
    %s24 = sphi 0, %s22
    %s32 = sphi 0, %s32
    %s34 = sphi 0, %s32
    %s35 = sphi 0, %s34
    %s49 = sphi 0, %s35
    %s53 = sphi 0, %s53
    %s55 = sphi 0, %s53
    %s56 = sphi 0, %s55
    %s70 = sphi 0, %s56
    %s74 = sphi 0, %s74
    %s76 = sphi 0, %s74
    %s77 = sphi 0, %s76
    %s91 = sphi 0, %s77
    %s99 = sphi 0, %s101
    %s102 = sphi 0, %s99
    %s103 = sphi 0, %s102
    %s119 = sphi 0, %s103
    %s127 = sphi 0, %s129
    %s130 = sphi 0, %s127
    %s131 = sphi 0, %s130
    %s147 = sphi 0, %s131
    %s155 = sphi 0, %s157
    %s158 = sphi 0, %s155
    %s159 = sphi 0, %s158
    %s175 = sphi 0, %s159
  $region4: #{vq_forward.1} parent=0 // loop_header_branch
    %15 = sbr.rel (%p13) target = $region8
  $region5: #{vq_forward.1} parent=0 // loop_body
    %s17 = ssub.s32 %s12, 1
    %s18 = ssub.s32 %s12, 2
    %s25 = sadd.s32 1, %s20
    %p26 = scmp.ge.s32.totalorder %s25, 1
    %s27 = scalar_select %p26, 0, %s25
    %s28 = sadd.s32 1, %s19
    %s29 = scalar_select %p26, %s28, %s19
    %p30 = scmp.ge.s32.totalorder %s29, 2
    %s31 = scalar_select %p30, 0, %s29
    %s33 = sadd.s32 %s32, 1
    %p36 = scmp.eq.s32.totalorder %s12, 1
    %p37 = scmp.ne.s32.totalorder %s32, %s34
    %p38 = scmp.eq.s32.totalorder %s12, 0
    %p39 = por %p37, %p38
    %p40 = scmp.ne.s32.totalorder %s32, %s34
    %p41 = scmp.eq.s32.totalorder %s17, 1
    %p42 = por %p40, %p41
    %p43 = scmp.ne.s32.totalorder %s34, %s35
    %p44 = scmp.eq.s32.totalorder %s17, 0
    %p45 = por %p43, %p44
    %p46 = scmp.ne.s32.totalorder %s34, %s35
    %p47 = scmp.eq.s32.totalorder %s18, 1
    %p48 = por %p46, %p47
    %p50 = scmp.ne.s32.totalorder %s35, %s49
    %p51 = scmp.eq.s32.totalorder %s18, 0
    %p52 = por %p50, %p51
    %s54 = sadd.s32 %s53, 1
    %p57 = scmp.eq.s32.totalorder %s12, 1
    %p58 = scmp.ne.s32.totalorder %s53, %s55
    %p59 = scmp.eq.s32.totalorder %s12, 0
    %p60 = por %p58, %p59
    %p61 = scmp.ne.s32.totalorder %s53, %s55
    %p62 = scmp.eq.s32.totalorder %s17, 1
    %p63 = por %p61, %p62
    %p64 = scmp.ne.s32.totalorder %s55, %s56
    %p65 = scmp.eq.s32.totalorder %s17, 0
    %p66 = por %p64, %p65
    %p67 = scmp.ne.s32.totalorder %s55, %s56
    %p68 = scmp.eq.s32.totalorder %s18, 1
    %p69 = por %p67, %p68
    %p71 = scmp.ne.s32.totalorder %s56, %s70
    %p72 = scmp.eq.s32.totalorder %s18, 0
    %p73 = por %p71, %p72
    %s75 = sadd.s32 %s74, 1
    %p78 = scmp.eq.s32.totalorder %s12, 1
    %p79 = scmp.ne.s32.totalorder %s74, %s76
    %p80 = scmp.eq.s32.totalorder %s12, 0
    %p81 = por %p79, %p80
    %p82 = scmp.ne.s32.totalorder %s74, %s76
    %p83 = scmp.eq.s32.totalorder %s17, 1
    %p84 = por %p82, %p83
    %p85 = scmp.ne.s32.totalorder %s76, %s77
    %p86 = scmp.eq.s32.totalorder %s17, 0
    %p87 = por %p85, %p86
    %p88 = scmp.ne.s32.totalorder %s76, %s77
    %p89 = scmp.eq.s32.totalorder %s18, 1
    %p90 = por %p88, %p89
    %p92 = scmp.ne.s32.totalorder %s77, %s91
    %p93 = scmp.eq.s32.totalorder %s18, 0
    %p94 = por %p92, %p93
    %s95 = ssub.s32 %s19, %s31
    %s96 = ssub.s32 %s20, %s27
    %s97 = sor.u32 %s95, %s96
    %p98 = scmp.eq.s32.totalorder %s97, 0
    %s100 = sadd.s32 %s99, 1
    %s101 = scalar_select %p98, %s99, %s100
    %p104 = pneg %p98
    %p105 = scmp.eq.s32.totalorder %s12, 1
    %p106 = por %p104, %p105
    %p107 = scmp.ne.s32.totalorder %s99, %s102
    %p108 = scmp.eq.s32.totalorder %s12, 0
    %p109 = por %p107, %p108
    %p110 = scmp.ne.s32.totalorder %s99, %s102
    %p111 = scmp.eq.s32.totalorder %s17, 1
    %p112 = por %p110, %p111
    %p113 = scmp.ne.s32.totalorder %s102, %s103
    %p114 = scmp.eq.s32.totalorder %s17, 0
    %p115 = por %p113, %p114
    %p116 = scmp.ne.s32.totalorder %s102, %s103
    %p117 = scmp.eq.s32.totalorder %s18, 1
    %p118 = por %p116, %p117
    %p120 = scmp.ne.s32.totalorder %s103, %s119
    %p121 = scmp.eq.s32.totalorder %s18, 0
    %p122 = por %p120, %p121
    %s123 = ssub.s32 %s19, %s31
    %s124 = ssub.s32 %s20, %s27
    %s125 = sor.u32 %s123, %s124
    %p126 = scmp.eq.s32.totalorder %s125, 0
    %s128 = sadd.s32 %s127, 1
    %s129 = scalar_select %p126, %s127, %s128
    %p132 = pneg %p126
    %p133 = scmp.eq.s32.totalorder %s12, 1
    %p134 = por %p132, %p133
    %p135 = scmp.ne.s32.totalorder %s127, %s130
    %p136 = scmp.eq.s32.totalorder %s12, 0
    %p137 = por %p135, %p136
    %p138 = scmp.ne.s32.totalorder %s127, %s130
    %p139 = scmp.eq.s32.totalorder %s17, 1
    %p140 = por %p138, %p139
    %p141 = scmp.ne.s32.totalorder %s130, %s131
    %p142 = scmp.eq.s32.totalorder %s17, 0
    %p143 = por %p141, %p142
    %p144 = scmp.ne.s32.totalorder %s130, %s131
    %p145 = scmp.eq.s32.totalorder %s18, 1
    %p146 = por %p144, %p145
    %p148 = scmp.ne.s32.totalorder %s131, %s147
    %p149 = scmp.eq.s32.totalorder %s18, 0
    %p150 = por %p148, %p149
    %s151 = ssub.s32 %s19, %s31
    %s152 = ssub.s32 %s20, %s27
    %s153 = sor.u32 %s151, %s152
    %p154 = scmp.eq.s32.totalorder %s153, 0
    %s156 = sadd.s32 %s155, 1
    %s157 = scalar_select %p154, %s155, %s156
    %p160 = pneg %p154
    %p161 = scmp.eq.s32.totalorder %s12, 1
    %p162 = por %p160, %p161
    %p163 = scmp.ne.s32.totalorder %s155, %s158
    %p164 = scmp.eq.s32.totalorder %s12, 0
    %p165 = por %p163, %p164
    %p166 = scmp.ne.s32.totalorder %s155, %s158
    %p167 = scmp.eq.s32.totalorder %s17, 1
    %p168 = por %p166, %p167
    %p169 = scmp.ne.s32.totalorder %s158, %s159
    %p170 = scmp.eq.s32.totalorder %s17, 0
    %p171 = por %p169, %p170
    %p172 = scmp.ne.s32.totalorder %s158, %s159
    %p173 = scmp.eq.s32.totalorder %s18, 1
    %p174 = por %p172, %p173
    %p176 = scmp.ne.s32.totalorder %s159, %s175
    %p177 = scmp.eq.s32.totalorder %s18, 0
    %p178 = por %p176, %p177
    %p179 = scmp.le.s32.totalorder 1, %s12
    %p180 = scmp.lt.s32.totalorder %s12, 3
    %p181 = pnand %p179, %p180
    %p182 = pneg %p181
    // Predicated region
    $region9: #{vq_forward.1} parent=5 // pred_check
      _
    $region10: #{vq_forward.1} parent=5 // pred_check_branch
      %184 = sbr.rel (%p181) target = $region12
    $region11: #{vq_forward.1} parent=5 // pred_region
      %s185 = ssub.s32 %s12, 1
      // Predicated region
      $region13: #{vq_forward.1} parent=11 // pred_check
        %p186 = pneg %p45
      $region14: #{vq_forward.1} parent=11 // pred_check_branch
        %188 = sbr.rel (%p186) target = $region16
      $region15: #{vq_forward.1} parent=11 // pred_region
        _
      $region16: #{vq_forward.1} parent=11 // pred_fallthru
        _
      // Predicated region
      $region17: #{vq_forward.1} parent=11 // pred_check
        %p189 = pneg %p66
      $region18: #{vq_forward.1} parent=11 // pred_check_branch
        %191 = sbr.rel (%p189) target = $region20
      $region19: #{vq_forward.1} parent=11 // pred_region
        _
      $region20: #{vq_forward.1} parent=11 // pred_fallthru
        _
      // Predicated region
      $region21: #{vq_forward.1} parent=11 // pred_check
        %p192 = pneg %p87
      $region22: #{vq_forward.1} parent=11 // pred_check_branch
        %194 = sbr.rel (%p192) target = $region24
      $region23: #{vq_forward.1} parent=11 // pred_region
        _
      $region24: #{vq_forward.1} parent=11 // pred_fallthru
        _
    $region12: #{vq_forward.1} parent=5 // pred_fallthru
      _
    %p195 = scmp.lt.s32.totalorder %s12, 2
    // Predicated region
    $region25: #{vq_forward.1} parent=5 // pred_check
      %p196 = pneg %p195
    $region26: #{vq_forward.1} parent=5 // pred_check_branch
      %198 = sbr.rel (%p196) target = $region28
    $region27: #{vq_forward.1} parent=5 // pred_region
      // Predicated region
      $region29: #{vq_forward.1} parent=27 // pred_check
        %p199 = pneg %p109
      $region30: #{vq_forward.1} parent=27 // pred_check_branch
        %201 = sbr.rel (%p199) target = $region32
      $region31: #{vq_forward.1} parent=27 // pred_region
        %s202 = smul.u32 2, %s20
        %p203 = scmp.lt.s32.totalorder %s19, 1
        %s204 = scalar_select %p203, %s19, 1
        %p205 = scmp.lt.s32.totalorder %s202, 1
        %s206 = scalar_select %p205, %s202, 1
        %s207 = smul.addr %s204, 8
        %s208 = sadd.s32 %s206, %s207
        %s209 = smul.addr %s208, 8
        %s210 = scalar_lea.vmem %s3, %s209
        %s211 = smul.u32 2, %s20
      $region32: #{vq_forward.1} parent=27 // pred_fallthru
        _
    $region28: #{vq_forward.1} parent=5 // pred_fallthru
      _
    %p212 = scmp.le.s32.totalorder 1, %s12
    %p213 = scmp.lt.s32.totalorder %s12, 3
    %p214 = pnand %p212, %p213
    %p215 = pneg %p214
    // Predicated region
    $region33: #{vq_forward.1} parent=5 // pred_check
      _
    $region34: #{vq_forward.1} parent=5 // pred_check_branch
      %217 = sbr.rel (%p214) target = $region36
    $region35: #{vq_forward.1} parent=5 // pred_region
      %s218 = ssub.s32 %s12, 1
      %p219 = pneg %p45
      %p220 = pneg %p42
      %p221 = pneg %p66
      %p222 = pneg %p63
      %p223 = pneg %p87
      %p224 = pneg %p84
      %s225 = smul.u32 2, %s22
      %p226 = scmp.lt.s32.totalorder %s21, 1
      %s227 = scalar_select %p226, %s21, 1
      %p228 = scmp.lt.s32.totalorder %s225, 1
      %s229 = scalar_select %p228, %s225, 1
      %s230 = smul.addr %s227, 8
      %s231 = sadd.s32 %s229, %s230
      %s232 = smul.addr %s231, 8
      %s233 = scalar_lea.vmem %s3, %s232
      %p234 = pneg %p115
      %p235 = pneg %p112
      %p236 = pneg %p143
      %p237 = pneg %p140
      %s238 = smul.u32 2, %s22
      %p239 = scmp.lt.s32.totalorder %s21, 1
      %s240 = scalar_select %p239, %s21, 1
      %p241 = scmp.lt.s32.totalorder %s238, 1
      %s242 = scalar_select %p241, %s238, 1
      %s243 = smul.addr %s240, 2
      %s244 = sadd.s32 %s242, %s243
      %s245 = scalar_lea.vmem %s4, %s244
      %p246 = pneg %p171
      %p247 = pneg %p168
      %s248 = smul.u32 2, %s22
      %p249 = scmp.lt.s32.totalorder %s21, 1
      %s250 = scalar_select %p249, %s21, 1
      %p251 = scmp.lt.s32.totalorder %s248, 1
      %s252 = scalar_select %p251, %s248, 1
      %s253 = smul.addr %s250, 8
      %s254 = sadd.s32 %s252, %s253
      %s255 = smul.addr %s254, 8
      %s256 = scalar_lea.vmem %s5, %s255
      %s257 = smul.u32 2, %s22
      %p258 = scmp.lt.s32.totalorder %s21, 1
      %s259 = scalar_select %p258, %s21, 1
      %p260 = scmp.lt.s32.totalorder %s257, 1
      %s261 = scalar_select %p260, %s257, 1
      %s262 = smul.addr %s259, 8
      %s263 = sadd.s32 %s261, %s262
      %s264 = smul.addr %s263, 8
      %s265 = scalar_lea.vmem %s3, %s264
      %s266 = smul.u32 2, %s22
      %s267 = smul.u32 2, %s22
      %p268 = scmp.lt.s32.totalorder %s21, 1
      %s269 = scalar_select %p268, %s21, 1
      %p270 = scmp.lt.s32.totalorder %s267, 1
      %s271 = scalar_select %p270, %s267, 1
      %s272 = smul.addr %s269, 2
      %s273 = sadd.s32 %s271, %s272
      %s274 = scalar_lea.vmem %s4, %s273
      %s275 = smul.u32 2, %s22
      %s276 = smul.u32 2, %s22
      %p277 = scmp.lt.s32.totalorder %s21, 1
      %s278 = scalar_select %p277, %s21, 1
      %p279 = scmp.lt.s32.totalorder %s276, 1
      %s280 = scalar_select %p279, %s276, 1
      %s281 = smul.addr %s278, 8
      %s282 = sadd.s32 %s280, %s281
      %s283 = smul.addr %s282, 8
      %s284 = scalar_lea.vmem %s5, %s283
      %s285 = smul.u32 2, %s22
      %v286 = vld [vmem:[%s265] sm:$0xff]
      %v287 = vld [vmem:[%s265 + $0x8] sm:$0xff]
      %v288 = vld [vmem:[%s265 + $0x10] sm:$0xff]
      %v289 = vld [vmem:[%s265 + $0x18] sm:$0xff]
      %v290 = vld [vmem:[%s265 + $0x20] sm:$0xff]
      %v291 = vld [vmem:[%s265 + $0x28] sm:$0xff]
      %v292 = vld [vmem:[%s265 + $0x30] sm:$0xff]
      %v293 = vld [vmem:[%s265 + $0x38] sm:$0xff]
      %v294 = vld [vmem:[%s0] sm:$0xff]
      %v295 = vld [vmem:[%s0 + $0x8] sm:$0xff]
      %v296 = vld [vmem:[%s0 + $0x10] sm:$0xff]
      %v297 = vld [vmem:[%s0 + $0x18] sm:$0xff]
      %v298 = vld [vmem:[%s0 + $0x20] sm:$0xff]
      %v299 = vld [vmem:[%s0 + $0x28] sm:$0xff]
      %v300 = vld [vmem:[%s0 + $0x30] sm:$0xff]
      %v301 = vld [vmem:[%s0 + $0x38] sm:$0xff]
      %v302 = vld [vmem:[%s0 + $0x40] sm:$0xff]
      %v303 = vld [vmem:[%s0 + $0x48] sm:$0xff]
      %v304 = vld [vmem:[%s0 + $0x50] sm:$0xff]
      %v305 = vld [vmem:[%s0 + $0x58] sm:$0xff]
      %v306 = vld [vmem:[%s0 + $0x60] sm:$0xff]
      %v307 = vld [vmem:[%s0 + $0x68] sm:$0xff]
      %v308 = vld [vmem:[%s0 + $0x70] sm:$0xff]
      %v309 = vld [vmem:[%s0 + $0x78] sm:$0xff]
      %vm310 = vcmask 261120
      %v312 = vsel %vm310, %v294, 0
      %v315 = vsel %vm310, %v295, 0
      %v318 = vsel %vm310, %v296, 0
      %v321 = vsel %vm310, %v297, 0
      %v324 = vsel %vm310, %v298, 0
      %v327 = vsel %vm310, %v299, 0
      %v330 = vsel %vm310, %v300, 0
      %v333 = vsel %vm310, %v301, 0
      %v336 = vsel %vm310, %v302, 0
      %v339 = vsel %vm310, %v303, 0
      %v342 = vsel %vm310, %v304, 0
      %v345 = vsel %vm310, %v305, 0
      %v348 = vsel %vm310, %v306, 0
      %v351 = vsel %vm310, %v307, 0
      %v354 = vsel %vm310, %v308, 0
      %v357 = vsel %vm310, %v309, 0
      %359 = vmatprep.subr.mxu0 0.0
      %360 = vmatpush1.msra.mxu0 0.0
      %361 = vmatprep.subr.mxu0 0.0
      %362 = vmatpush1.msra.mxu0 0.0
      %363 = vmatprep.subr.mxu0 0.0
      %364 = vmatpush1.msra.mxu0 0.0
      %365 = vmatprep.subr.mxu0 0.0
      %366 = vmatpush1.msra.mxu0 0.0
      %367 = vmatprep.subr.mxu0 0.0
      %368 = vmatpush1.msra.mxu0 0.0
      %369 = vmatprep.subr.mxu0 0.0
      %370 = vmatpush1.msra.mxu0 0.0
      %371 = vmatprep.subr.mxu0 0.0
      %372 = vmatpush1.msra.mxu0 0.0
      %373 = vmatprep.subr.mxu0 0.0
      %374 = vmatpush1.msra.mxu0 0.0
      %375 = vmatprep.subr.mxu0 0.0
      %376 = vmatpush1.msra.mxu0 0.0
      %377 = vmatprep.subr.mxu0 0.0
      %378 = vmatpush1.msra.mxu0 0.0
      %379 = vmatprep.subr.mxu0 0.0
      %380 = vmatpush1.msra.mxu0 0.0
      %381 = vmatprep.subr.mxu0 0.0
      %382 = vmatpush1.msra.mxu0 0.0
      %383 = vmatprep.subr.mxu0 %v293
      %384 = vmatpush1.msra.mxu0 %v292
      %385 = vmatprep.subr.mxu0 %v291
      %386 = vmatpush1.msra.mxu0 %v290
      %387 = vmatprep.subr.mxu0 %v289
      %388 = vmatpush1.msra.mxu0 %v288
      %389 = vmatprep.subr.mxu0 %v287
      %390 = vmatpush1.msra.mxu0 %v286
      %391 = vmatprep.subr.mxu0 0.0
      %392 = vmatpush2.msra.mxu0 0.0
      %393 = vmatprep.subr.mxu0 0.0
      %394 = vmatpush2.msra.mxu0 0.0
      %395 = vmatprep.subr.mxu0 0.0
      %396 = vmatpush2.msra.mxu0 0.0
      %397 = vmatprep.subr.mxu0 0.0
      %398 = vmatpush2.msra.mxu0 0.0
      %399 = vmatprep.subr.mxu0 0.0
      %400 = vmatpush2.msra.mxu0 0.0
      %401 = vmatprep.subr.mxu0 0.0
      %402 = vmatpush2.msra.mxu0 0.0
      %403 = vmatprep.subr.mxu0 0.0
      %404 = vmatpush2.msra.mxu0 0.0
      %405 = vmatprep.subr.mxu0 0.0
      %406 = vmatpush2.msra.mxu0 0.0
      %407 = vmatprep.subr.mxu0 0.0
      %408 = vmatpush2.msra.mxu0 0.0
      %409 = vmatprep.subr.mxu0 0.0
      %410 = vmatpush2.msra.mxu0 0.0
      %411 = vmatprep.subr.mxu0 0.0
      %412 = vmatpush2.msra.mxu0 0.0
      %413 = vmatprep.subr.mxu0 0.0
      %414 = vmatpush2.msra.mxu0 0.0
      %415 = vmatprep.subr.mxu0 0.0
      %416 = vmatpush2.msra.mxu0 0.0
      %417 = vmatprep.subr.mxu0 0.0
      %418 = vmatpush2.msra.mxu0 0.0
      %419 = vmatprep.subr.mxu0 0.0
      %420 = vmatpush2.msra.mxu0 0.0
      %421 = vmatprep.subr.mxu0 0.0
      %422 = vmatpush2.msra.mxu0 0.0
      %423 = vmatprep.mubr.f32.mxu0 0.0
      %424 = vmatmul.mubr.f32.gmra.mxu0 %v312
      %v425 = vpop.f32.mrf.mxu0
      %v426 = vadd.f32 0.0, %v425
      %v427 = vpop.f32.mrf.mxu0
      %v428 = vadd.f32 0.0, %v427
      %429 = vmatprep.mubr.f32.mxu0 0.0
      %430 = vmatmul.mubr.f32.gmra.mxu0 %v315
      %v431 = vpop.f32.mrf.mxu0
      %v432 = vadd.f32 0.0, %v431
      %v433 = vpop.f32.mrf.mxu0
      %v434 = vadd.f32 0.0, %v433
      %435 = vmatprep.mubr.f32.mxu0 0.0
      %436 = vmatmul.mubr.f32.gmra.mxu0 %v318
      %v437 = vpop.f32.mrf.mxu0
      %v438 = vadd.f32 0.0, %v437
      %v439 = vpop.f32.mrf.mxu0
      %v440 = vadd.f32 0.0, %v439
      %441 = vmatprep.mubr.f32.mxu0 0.0
      %442 = vmatmul.mubr.f32.gmra.mxu0 %v321
      %v443 = vpop.f32.mrf.mxu0
      %v444 = vadd.f32 0.0, %v443
      %v445 = vpop.f32.mrf.mxu0
      %v446 = vadd.f32 0.0, %v445
      %447 = vmatprep.mubr.f32.mxu0 0.0
      %448 = vmatmul.mubr.f32.gmra.mxu0 %v324
      %v449 = vpop.f32.mrf.mxu0
      %v450 = vadd.f32 0.0, %v449
      %v451 = vpop.f32.mrf.mxu0
      %v452 = vadd.f32 0.0, %v451
      %453 = vmatprep.mubr.f32.mxu0 0.0
      %454 = vmatmul.mubr.f32.gmra.mxu0 %v327
      %v455 = vpop.f32.mrf.mxu0
      %v456 = vadd.f32 0.0, %v455
      %v457 = vpop.f32.mrf.mxu0
      %v458 = vadd.f32 0.0, %v457
      %459 = vmatprep.mubr.f32.mxu0 0.0
      %460 = vmatmul.mubr.f32.gmra.mxu0 %v330
      %v461 = vpop.f32.mrf.mxu0
      %v462 = vadd.f32 0.0, %v461
      %v463 = vpop.f32.mrf.mxu0
      %v464 = vadd.f32 0.0, %v463
      %465 = vmatprep.mubr.f32.mxu0 0.0
      %466 = vmatmul.mubr.f32.gmra.mxu0 %v333
      %v467 = vpop.f32.mrf.mxu0
      %v468 = vadd.f32 0.0, %v467
      %v469 = vpop.f32.mrf.mxu0
      %v470 = vadd.f32 0.0, %v469
      %471 = vmatprep.mubr.f32.mxu0 0.0
      %472 = vmatmul.mubr.f32.gmra.mxu0 %v336
      %v473 = vpop.f32.mrf.mxu0
      %v474 = vadd.f32 0.0, %v473
      %v475 = vpop.f32.mrf.mxu0
      %v476 = vadd.f32 0.0, %v475
      %477 = vmatprep.mubr.f32.mxu0 0.0
      %478 = vmatmul.mubr.f32.gmra.mxu0 %v339
      %v479 = vpop.f32.mrf.mxu0
      %v480 = vadd.f32 0.0, %v479
      %v481 = vpop.f32.mrf.mxu0
      %v482 = vadd.f32 0.0, %v481
      %483 = vmatprep.mubr.f32.mxu0 0.0
      %484 = vmatmul.mubr.f32.gmra.mxu0 %v342
      %v485 = vpop.f32.mrf.mxu0
      %v486 = vadd.f32 0.0, %v485
      %v487 = vpop.f32.mrf.mxu0
      %v488 = vadd.f32 0.0, %v487
      %489 = vmatprep.mubr.f32.mxu0 0.0
      %490 = vmatmul.mubr.f32.gmra.mxu0 %v345
      %v491 = vpop.f32.mrf.mxu0
      %v492 = vadd.f32 0.0, %v491
      %v493 = vpop.f32.mrf.mxu0
      %v494 = vadd.f32 0.0, %v493
      %495 = vmatprep.mubr.f32.mxu0 0.0
      %496 = vmatmul.mubr.f32.gmra.mxu0 %v348
      %v497 = vpop.f32.mrf.mxu0
      %v498 = vadd.f32 0.0, %v497
      %v499 = vpop.f32.mrf.mxu0
      %v500 = vadd.f32 0.0, %v499
      %501 = vmatprep.mubr.f32.mxu0 0.0
      %502 = vmatmul.mubr.f32.gmra.mxu0 %v351
      %v503 = vpop.f32.mrf.mxu0
      %v504 = vadd.f32 0.0, %v503
      %v505 = vpop.f32.mrf.mxu0
      %v506 = vadd.f32 0.0, %v505
      %507 = vmatprep.mubr.f32.mxu0 0.0
      %508 = vmatmul.mubr.f32.gmra.mxu0 %v354
      %v509 = vpop.f32.mrf.mxu0
      %v510 = vadd.f32 0.0, %v509
      %v511 = vpop.f32.mrf.mxu0
      %v512 = vadd.f32 0.0, %v511
      %513 = vmatprep.mubr.f32.mxu0 0.0
      %514 = vmatmul.mubr.f32.gmra.mxu0 %v357
      %v515 = vpop.f32.mrf.mxu0
      %v516 = vadd.f32 0.0, %v515
      %v517 = vpop.f32.mrf.mxu0
      %v518 = vadd.f32 0.0, %v517
      %519 = vdwg.mxu0
      %v520 = vld [vmem:[%s2] sm:$0xff]
      %v521 = vld [vmem:[%s2 + $0x8] sm:$0xff]
      %v522 = vld [vmem:[%s2 + $0x10] sm:$0xff]
      %v523 = vld [vmem:[%s2 + $0x18] sm:$0xff]
      %v524 = vld [vmem:[%s2 + $0x20] sm:$0xff]
      %v525 = vld [vmem:[%s2 + $0x28] sm:$0xff]
      %v526 = vld [vmem:[%s2 + $0x30] sm:$0xff]
      %v527 = vld [vmem:[%s2 + $0x38] sm:$0xff]
      %v528 = vld [vmem:[%s2 + $0x40] sm:$0xff]
      %v529 = vld [vmem:[%s2 + $0x48] sm:$0xff]
      %v530 = vld [vmem:[%s2 + $0x50] sm:$0xff]
      %v531 = vld [vmem:[%s2 + $0x58] sm:$0xff]
      %v532 = vld [vmem:[%s2 + $0x60] sm:$0xff]
      %v533 = vld [vmem:[%s2 + $0x68] sm:$0xff]
      %v534 = vld [vmem:[%s2 + $0x70] sm:$0xff]
      %v535 = vld [vmem:[%s2 + $0x78] sm:$0xff]
      %v536 = vmul.f32 %v426, 2.0
      %v537 = vmul.f32 %v428, 2.0
      %v538 = vmul.f32 %v432, 2.0
      %v539 = vmul.f32 %v434, 2.0
      %v540 = vmul.f32 %v438, 2.0
      %v541 = vmul.f32 %v440, 2.0
      %v542 = vmul.f32 %v444, 2.0
      %v543 = vmul.f32 %v446, 2.0
      %v544 = vmul.f32 %v450, 2.0
      %v545 = vmul.f32 %v452, 2.0
      %v546 = vmul.f32 %v456, 2.0
      %v547 = vmul.f32 %v458, 2.0
      %v548 = vmul.f32 %v462, 2.0
      %v549 = vmul.f32 %v464, 2.0
      %v550 = vmul.f32 %v468, 2.0
      %v551 = vmul.f32 %v470, 2.0
      %v552 = vmul.f32 %v474, 2.0
      %v553 = vmul.f32 %v476, 2.0
      %v554 = vmul.f32 %v480, 2.0
      %v555 = vmul.f32 %v482, 2.0
      %v556 = vmul.f32 %v486, 2.0
      %v557 = vmul.f32 %v488, 2.0
      %v558 = vmul.f32 %v492, 2.0
      %v559 = vmul.f32 %v494, 2.0
      %v560 = vmul.f32 %v498, 2.0
      %v561 = vmul.f32 %v500, 2.0
      %v562 = vmul.f32 %v504, 2.0
      %v563 = vmul.f32 %v506, 2.0
      %v564 = vmul.f32 %v510, 2.0
      %v565 = vmul.f32 %v512, 2.0
      %v566 = vmul.f32 %v516, 2.0
      %v567 = vmul.f32 %v518, 2.0
      %569 = vset.pattern.permute.xlu0 0
      %570 = vperm.xlu0 %569, %v520
      %v571 = vpop.permute.xlu0 %570
      %574 = vset.pattern.permute.xlu0 0
      %575 = vperm.xlu0 %574, %v521
      %v576 = vpop.permute.xlu0 %575
      %579 = vset.pattern.permute.xlu0 0
      %580 = vperm.xlu0 %579, %v522
      %v581 = vpop.permute.xlu0 %580
      %584 = vset.pattern.permute.xlu0 0
      %585 = vperm.xlu0 %584, %v523
      %v586 = vpop.permute.xlu0 %585
      %589 = vset.pattern.permute.xlu0 0
      %590 = vperm.xlu0 %589, %v524
      %v591 = vpop.permute.xlu0 %590
      %594 = vset.pattern.permute.xlu0 0
      %595 = vperm.xlu0 %594, %v525
      %v596 = vpop.permute.xlu0 %595
      %599 = vset.pattern.permute.xlu0 0
      %600 = vperm.xlu0 %599, %v526
      %v601 = vpop.permute.xlu0 %600
      %604 = vset.pattern.permute.xlu0 0
      %605 = vperm.xlu0 %604, %v527
      %v606 = vpop.permute.xlu0 %605
      %609 = vset.pattern.permute.xlu0 0
      %610 = vperm.xlu0 %609, %v528
      %v611 = vpop.permute.xlu0 %610
      %614 = vset.pattern.permute.xlu0 0
      %615 = vperm.xlu0 %614, %v529
      %v616 = vpop.permute.xlu0 %615
      %619 = vset.pattern.permute.xlu0 0
      %620 = vperm.xlu0 %619, %v530
      %v621 = vpop.permute.xlu0 %620
      %624 = vset.pattern.permute.xlu0 0
      %625 = vperm.xlu0 %624, %v531
      %v626 = vpop.permute.xlu0 %625
      %629 = vset.pattern.permute.xlu0 0
      %630 = vperm.xlu0 %629, %v532
      %v631 = vpop.permute.xlu0 %630
      %634 = vset.pattern.permute.xlu0 0
      %635 = vperm.xlu0 %634, %v533
      %v636 = vpop.permute.xlu0 %635
      %639 = vset.pattern.permute.xlu0 0
      %640 = vperm.xlu0 %639, %v534
      %v641 = vpop.permute.xlu0 %640
      %644 = vset.pattern.permute.xlu0 0
      %645 = vperm.xlu0 %644, %v535
      %v646 = vpop.permute.xlu0 %645
      %v648 = vsub.f32 %v571, %v536
      %v649 = vsub.f32 %v571, %v537
      %v650 = vsub.f32 %v576, %v538
      %v651 = vsub.f32 %v576, %v539
      %v652 = vsub.f32 %v581, %v540
      %v653 = vsub.f32 %v581, %v541
      %v654 = vsub.f32 %v586, %v542
      %v655 = vsub.f32 %v586, %v543
      %v656 = vsub.f32 %v591, %v544
      %v657 = vsub.f32 %v591, %v545
      %v658 = vsub.f32 %v596, %v546
      %v659 = vsub.f32 %v596, %v547
      %v660 = vsub.f32 %v601, %v548
      %v661 = vsub.f32 %v601, %v549
      %v662 = vsub.f32 %v606, %v550
      %v663 = vsub.f32 %v606, %v551
      %v664 = vsub.f32 %v611, %v552
      %v665 = vsub.f32 %v611, %v553
      %v666 = vsub.f32 %v616, %v554
      %v667 = vsub.f32 %v616, %v555
      %v668 = vsub.f32 %v621, %v556
      %v669 = vsub.f32 %v621, %v557
      %v670 = vsub.f32 %v626, %v558
      %v671 = vsub.f32 %v626, %v559
      %v672 = vsub.f32 %v631, %v560
      %v673 = vsub.f32 %v631, %v561
      %v674 = vsub.f32 %v636, %v562
      %v675 = vsub.f32 %v636, %v563
      %v676 = vsub.f32 %v641, %v564
      %v677 = vsub.f32 %v641, %v565
      %v678 = vsub.f32 %v646, %v566
      %v679 = vsub.f32 %v646, %v567
      %v680 = vmin.f32 %v648, %v652
      %v681 = vmin.f32 %v650, %v654
      %v682 = vmin.f32 %v680, %v656
      %v683 = vmin.f32 %v681, %v658
      %v684 = vmin.f32 %v682, %v660
      %v685 = vmin.f32 %v683, %v662
      %v686 = vmin.f32 %v684, %v664
      %v687 = vmin.f32 %v685, %v666
      %v688 = vmin.f32 %v686, %v668
      %v689 = vmin.f32 %v687, %v670
      %v690 = vmin.f32 %v688, %v672
      %v691 = vmin.f32 %v689, %v674
      %v692 = vmin.f32 %v690, %v676
      %v693 = vmin.f32 %v691, %v678
      %v694 = vmin.f32 %v692, %v693
      %v695 = vrot.slane %v694, 4
      %v696 = vmin.f32 %v694, %v695
      %v697 = vrot.slane %v696, 2
      %v698 = vmin.f32 %v696, %v697
      %v699 = vrot.slane %v698, 1
      %v700 = vmin.f32 %v698, %v699
      %v701 = vmin.f32 %v649, %v653
      %v702 = vmin.f32 %v651, %v655
      %v703 = vmin.f32 %v701, %v657
      %v704 = vmin.f32 %v702, %v659
      %v705 = vmin.f32 %v703, %v661
      %v706 = vmin.f32 %v704, %v663
      %v707 = vmin.f32 %v705, %v665
      %v708 = vmin.f32 %v706, %v667
      %v709 = vmin.f32 %v707, %v669
      %v710 = vmin.f32 %v708, %v671
      %v711 = vmin.f32 %v709, %v673
      %v712 = vmin.f32 %v710, %v675
      %v713 = vmin.f32 %v711, %v677
      %v714 = vmin.f32 %v712, %v679
      %v715 = vmin.f32 %v713, %v714
      %v716 = vrot.slane %v715, 4
      %v717 = vmin.f32 %v715, %v716
      %v718 = vrot.slane %v717, 2
      %v719 = vmin.f32 %v717, %v718
      %v720 = vrot.slane %v719, 1
      %v721 = vmin.f32 %v719, %v720
      %v722 = vlaneseq
      %v723 = vshrl.u32 %v722, 7
      %v724 = vadd.s32 %v723, 8
      %v725 = vadd.s32 %v723, 16
      %v726 = vadd.s32 %v723, 24
      %v727 = vadd.s32 %v723, 32
      %v728 = vadd.s32 %v723, 40
      %v729 = vadd.s32 %v723, 48
      %v730 = vadd.s32 %v723, 56
      %v731 = vadd.s32 %v723, 64
      %v732 = vadd.s32 %v723, 72
      %v733 = vadd.s32 %v723, 80
      %v734 = vadd.s32 %v723, 88
      %v735 = vadd.s32 %v723, 96
      %v736 = vadd.s32 %v723, 104
      %v737 = vadd.s32 %v723, 112
      %v738 = vadd.s32 %v723, 120
      %vm739 = vcmp.eq.f32.partialorder %v648, %v700
      %vm740 = vcmp.eq.f32.partialorder %v649, %v721
      %vm741 = vcmp.eq.f32.partialorder %v650, %v700
      %vm742 = vcmp.eq.f32.partialorder %v651, %v721
      %vm743 = vcmp.eq.f32.partialorder %v652, %v700
      %vm744 = vcmp.eq.f32.partialorder %v653, %v721
      %vm745 = vcmp.eq.f32.partialorder %v654, %v700
      %vm746 = vcmp.eq.f32.partialorder %v655, %v721
      %vm747 = vcmp.eq.f32.partialorder %v656, %v700
      %vm748 = vcmp.eq.f32.partialorder %v657, %v721
      %vm749 = vcmp.eq.f32.partialorder %v658, %v700
      %vm750 = vcmp.eq.f32.partialorder %v659, %v721
      %vm751 = vcmp.eq.f32.partialorder %v660, %v700
      %vm752 = vcmp.eq.f32.partialorder %v661, %v721
      %vm753 = vcmp.eq.f32.partialorder %v662, %v700
      %vm754 = vcmp.eq.f32.partialorder %v663, %v721
      %vm755 = vcmp.eq.f32.partialorder %v664, %v700
      %vm756 = vcmp.eq.f32.partialorder %v665, %v721
      %vm757 = vcmp.eq.f32.partialorder %v666, %v700
      %vm758 = vcmp.eq.f32.partialorder %v667, %v721
      %vm759 = vcmp.eq.f32.partialorder %v668, %v700
      %vm760 = vcmp.eq.f32.partialorder %v669, %v721
      %vm761 = vcmp.eq.f32.partialorder %v670, %v700
      %vm762 = vcmp.eq.f32.partialorder %v671, %v721
      %vm763 = vcmp.eq.f32.partialorder %v672, %v700
      %vm764 = vcmp.eq.f32.partialorder %v673, %v721
      %vm765 = vcmp.eq.f32.partialorder %v674, %v700
      %vm766 = vcmp.eq.f32.partialorder %v675, %v721
      %vm767 = vcmp.eq.f32.partialorder %v676, %v700
      %vm768 = vcmp.eq.f32.partialorder %v677, %v721
      %vm769 = vcmp.eq.f32.partialorder %v678, %v700
      %vm770 = vcmp.eq.f32.partialorder %v679, %v721
      %v771 = vsel %vm739, %v723, 128
      %v772 = vsel %vm740, %v723, 128
      %v773 = vsel %vm741, %v724, 128
      %v774 = vsel %vm742, %v724, 128
      %v775 = vsel %vm743, %v725, 128
      %v776 = vsel %vm744, %v725, 128
      %v777 = vsel %vm745, %v726, 128
      %v778 = vsel %vm746, %v726, 128
      %v779 = vsel %vm747, %v727, 128
      %v780 = vsel %vm748, %v727, 128
      %v781 = vsel %vm749, %v728, 128
      %v782 = vsel %vm750, %v728, 128
      %v783 = vsel %vm751, %v729, 128
      %v784 = vsel %vm752, %v729, 128
      %v785 = vsel %vm753, %v730, 128
      %v786 = vsel %vm754, %v730, 128
      %v787 = vsel %vm755, %v731, 128
      %v788 = vsel %vm756, %v731, 128
      %v789 = vsel %vm757, %v732, 128
      %v790 = vsel %vm758, %v732, 128
      %v791 = vsel %vm759, %v733, 128
      %v792 = vsel %vm760, %v733, 128
      %v793 = vsel %vm761, %v734, 128
      %v794 = vsel %vm762, %v734, 128
      %v795 = vsel %vm763, %v735, 128
      %v796 = vsel %vm764, %v735, 128
      %v797 = vsel %vm765, %v736, 128
      %v798 = vsel %vm766, %v736, 128
      %v799 = vsel %vm767, %v737, 128
      %v800 = vsel %vm768, %v737, 128
      %v801 = vsel %vm769, %v738, 128
      %v802 = vsel %vm770, %v738, 128
      %vm803 = vcmp.lt.s32.totalorder %v771, %v775
      %v804 = vsel %vm803, %v771, %v775
      %vm805 = vcmp.lt.s32.totalorder %v773, %v777
      %v806 = vsel %vm805, %v773, %v777
      %vm807 = vcmp.lt.s32.totalorder %v804, %v779
      %v808 = vsel %vm807, %v804, %v779
      %vm809 = vcmp.lt.s32.totalorder %v806, %v781
      %v810 = vsel %vm809, %v806, %v781
      %vm811 = vcmp.lt.s32.totalorder %v808, %v783
      %v812 = vsel %vm811, %v808, %v783
      %vm813 = vcmp.lt.s32.totalorder %v810, %v785
      %v814 = vsel %vm813, %v810, %v785
      %vm815 = vcmp.lt.s32.totalorder %v812, %v787
      %v816 = vsel %vm815, %v812, %v787
      %vm817 = vcmp.lt.s32.totalorder %v814, %v789
      %v818 = vsel %vm817, %v814, %v789
      %vm819 = vcmp.lt.s32.totalorder %v816, %v791
      %v820 = vsel %vm819, %v816, %v791
      %vm821 = vcmp.lt.s32.totalorder %v818, %v793
      %v822 = vsel %vm821, %v818, %v793
      %vm823 = vcmp.lt.s32.totalorder %v820, %v795
      %v824 = vsel %vm823, %v820, %v795
      %vm825 = vcmp.lt.s32.totalorder %v822, %v797
      %v826 = vsel %vm825, %v822, %v797
      %vm827 = vcmp.lt.s32.totalorder %v824, %v799
      %v828 = vsel %vm827, %v824, %v799
      %vm829 = vcmp.lt.s32.totalorder %v826, %v801
      %v830 = vsel %vm829, %v826, %v801
      %vm831 = vcmp.lt.s32.totalorder %v828, %v830
      %v832 = vsel %vm831, %v828, %v830
      %v833 = vrot.slane %v832, 4
      %vm834 = vcmp.lt.s32.totalorder %v832, %v833
      %v835 = vsel %vm834, %v832, %v833
      %v836 = vrot.slane %v835, 2
      %vm837 = vcmp.lt.s32.totalorder %v835, %v836
      %v838 = vsel %vm837, %v835, %v836
      %v839 = vrot.slane %v838, 1
      %vm840 = vcmp.lt.s32.totalorder %v838, %v839
      %v841 = vsel %vm840, %v838, %v839
      %vm842 = vcmp.lt.s32.totalorder %v772, %v776
      %v843 = vsel %vm842, %v772, %v776
      %vm844 = vcmp.lt.s32.totalorder %v774, %v778
      %v845 = vsel %vm844, %v774, %v778
      %vm846 = vcmp.lt.s32.totalorder %v843, %v780
      %v847 = vsel %vm846, %v843, %v780
      %vm848 = vcmp.lt.s32.totalorder %v845, %v782
      %v849 = vsel %vm848, %v845, %v782
      %vm850 = vcmp.lt.s32.totalorder %v847, %v784
      %v851 = vsel %vm850, %v847, %v784
      %vm852 = vcmp.lt.s32.totalorder %v849, %v786
      %v853 = vsel %vm852, %v849, %v786
      %vm854 = vcmp.lt.s32.totalorder %v851, %v788
      %v855 = vsel %vm854, %v851, %v788
      %vm856 = vcmp.lt.s32.totalorder %v853, %v790
      %v857 = vsel %vm856, %v853, %v790
      %vm858 = vcmp.lt.s32.totalorder %v855, %v792
      %v859 = vsel %vm858, %v855, %v792
      %vm860 = vcmp.lt.s32.totalorder %v857, %v794
      %v861 = vsel %vm860, %v857, %v794
      %vm862 = vcmp.lt.s32.totalorder %v859, %v796
      %v863 = vsel %vm862, %v859, %v796
      %vm864 = vcmp.lt.s32.totalorder %v861, %v798
      %v865 = vsel %vm864, %v861, %v798
      %vm866 = vcmp.lt.s32.totalorder %v863, %v800
      %v867 = vsel %vm866, %v863, %v800
      %vm868 = vcmp.lt.s32.totalorder %v865, %v802
      %v869 = vsel %vm868, %v865, %v802
      %vm870 = vcmp.lt.s32.totalorder %v867, %v869
      %v871 = vsel %vm870, %v867, %v869
      %v872 = vrot.slane %v871, 4
      %vm873 = vcmp.lt.s32.totalorder %v871, %v872
      %v874 = vsel %vm873, %v871, %v872
      %v875 = vrot.slane %v874, 2
      %vm876 = vcmp.lt.s32.totalorder %v874, %v875
      %v877 = vsel %vm876, %v874, %v875
      %v878 = vrot.slane %v877, 1
      %vm879 = vcmp.lt.s32.totalorder %v877, %v878
      %v880 = vsel %vm879, %v877, %v878
      %v881 = vcombine.low %v841, %v880
      %v883 = vunpack.c.l.s4 1966171168
      %v884 = vunpack.c.0.s8 %v883
      %v885 = vlaneseq
      %v886 = vshrl.u32 %v885, 7
      %v887 = vsub.s32 %v884, %v886
      %v888 = vrot.slane %v881, %v887
      %v890 = vunpack.c.l.s4 1966171168
      %v891 = vunpack.c.0.s8 %v890
      %v892 = vlaneseq
      %v893 = vshrl.u32 %v892, 7
      %v894 = vsub.s32 %v891, %v893
      %v895 = vrot.slane %v888, %v894
      %v896 = vlaneseq
      %vm897 = vcmp.ge.s32.totalorder %v896, 0
      %vm898 = vcmp.lt.s32.totalorder %v896, 256
      %vm899 = vmand %vm897, %vm898
      %900 = vst.msk [vmem:[%s274] sm:$0x3] %vm899, %v895
      %vm901 = vcmp.eq.s32.totalorder %v723, %v841
      %vm902 = vcmp.eq.s32.totalorder %v723, %v880
      %vm903 = vcmp.eq.s32.totalorder %v724, %v841
      %vm904 = vcmp.eq.s32.totalorder %v724, %v880
      %vm905 = vcmp.eq.s32.totalorder %v725, %v841
      %vm906 = vcmp.eq.s32.totalorder %v725, %v880
      %vm907 = vcmp.eq.s32.totalorder %v726, %v841
      %vm908 = vcmp.eq.s32.totalorder %v726, %v880
      %vm909 = vcmp.eq.s32.totalorder %v727, %v841
      %vm910 = vcmp.eq.s32.totalorder %v727, %v880
      %vm911 = vcmp.eq.s32.totalorder %v728, %v841
      %vm912 = vcmp.eq.s32.totalorder %v728, %v880
      %vm913 = vcmp.eq.s32.totalorder %v729, %v841
      %vm914 = vcmp.eq.s32.totalorder %v729, %v880
      %vm915 = vcmp.eq.s32.totalorder %v730, %v841
      %vm916 = vcmp.eq.s32.totalorder %v730, %v880
      %vm917 = vcmp.eq.s32.totalorder %v731, %v841
      %vm918 = vcmp.eq.s32.totalorder %v731, %v880
      %vm919 = vcmp.eq.s32.totalorder %v732, %v841
      %vm920 = vcmp.eq.s32.totalorder %v732, %v880
      %vm921 = vcmp.eq.s32.totalorder %v733, %v841
      %vm922 = vcmp.eq.s32.totalorder %v733, %v880
      %vm923 = vcmp.eq.s32.totalorder %v734, %v841
      %vm924 = vcmp.eq.s32.totalorder %v734, %v880
      %vm925 = vcmp.eq.s32.totalorder %v735, %v841
      %vm926 = vcmp.eq.s32.totalorder %v735, %v880
      %vm927 = vcmp.eq.s32.totalorder %v736, %v841
      %vm928 = vcmp.eq.s32.totalorder %v736, %v880
      %vm929 = vcmp.eq.s32.totalorder %v737, %v841
      %vm930 = vcmp.eq.s32.totalorder %v737, %v880
      %vm931 = vcmp.eq.s32.totalorder %v738, %v841
      %vm932 = vcmp.eq.s32.totalorder %v738, %v880
      %v933 = vsel %vm901, 1, 0
      %v934 = vsel %vm902, 1, 0
      %v935 = vsel %vm903, 1, 0
      %v936 = vsel %vm904, 1, 0
      %v937 = vsel %vm905, 1, 0
      %v938 = vsel %vm906, 1, 0
      %v939 = vsel %vm907, 1, 0
      %v940 = vsel %vm908, 1, 0
      %v941 = vsel %vm909, 1, 0
      %v942 = vsel %vm910, 1, 0
      %v943 = vsel %vm911, 1, 0
      %v944 = vsel %vm912, 1, 0
      %v945 = vsel %vm913, 1, 0
      %v946 = vsel %vm914, 1, 0
      %v947 = vsel %vm915, 1, 0
      %v948 = vsel %vm916, 1, 0
      %v949 = vsel %vm917, 1, 0
      %v950 = vsel %vm918, 1, 0
      %v951 = vsel %vm919, 1, 0
      %v952 = vsel %vm920, 1, 0
      %v953 = vsel %vm921, 1, 0
      %v954 = vsel %vm922, 1, 0
      %v955 = vsel %vm923, 1, 0
      %v956 = vsel %vm924, 1, 0
      %v957 = vsel %vm925, 1, 0
      %v958 = vsel %vm926, 1, 0
      %v959 = vsel %vm927, 1, 0
      %v960 = vsel %vm928, 1, 0
      %v961 = vsel %vm929, 1, 0
      %v962 = vsel %vm930, 1, 0
      %v963 = vsel %vm931, 1, 0
      %v964 = vsel %vm932, 1, 0
      %v965 = vcvt.s32.f32 %v933
      %v966 = vcvt.s32.f32 %v934
      %v967 = vcvt.s32.f32 %v935
      %v968 = vcvt.s32.f32 %v936
      %v969 = vcvt.s32.f32 %v937
      %v970 = vcvt.s32.f32 %v938
      %v971 = vcvt.s32.f32 %v939
      %v972 = vcvt.s32.f32 %v940
      %v973 = vcvt.s32.f32 %v941
      %v974 = vcvt.s32.f32 %v942
      %v975 = vcvt.s32.f32 %v943
      %v976 = vcvt.s32.f32 %v944
      %v977 = vcvt.s32.f32 %v945
      %v978 = vcvt.s32.f32 %v946
      %v979 = vcvt.s32.f32 %v947
      %v980 = vcvt.s32.f32 %v948
      %v981 = vcvt.s32.f32 %v949
      %v982 = vcvt.s32.f32 %v950
      %v983 = vcvt.s32.f32 %v951
      %v984 = vcvt.s32.f32 %v952
      %v985 = vcvt.s32.f32 %v953
      %v986 = vcvt.s32.f32 %v954
      %v987 = vcvt.s32.f32 %v955
      %v988 = vcvt.s32.f32 %v956
      %v989 = vcvt.s32.f32 %v957
      %v990 = vcvt.s32.f32 %v958
      %v991 = vcvt.s32.f32 %v959
      %v992 = vcvt.s32.f32 %v960
      %v993 = vcvt.s32.f32 %v961
      %v994 = vcvt.s32.f32 %v962
      %v995 = vcvt.s32.f32 %v963
      %v996 = vcvt.s32.f32 %v964
      %v997 = vld [vmem:[%s1] sm:$0xff]
      %v998 = vld [vmem:[%s1 + $0x8] sm:$0xff]
      %v999 = vld [vmem:[%s1 + $0x10] sm:$0xff]
      %v1000 = vld [vmem:[%s1 + $0x18] sm:$0xff]
      %1001 = vmatprep.subr.mxu0 %v996
      %1002 = vmatpush1.msra.mxu0 %v995
      %1003 = vmatprep.subr.mxu0 %v994
      %1004 = vmatpush1.msra.mxu0 %v993
      %1005 = vmatprep.subr.mxu0 %v992
      %1006 = vmatpush1.msra.mxu0 %v991
      %1007 = vmatprep.subr.mxu0 %v990
      %1008 = vmatpush1.msra.mxu0 %v989
      %1009 = vmatprep.subr.mxu0 %v988
      %1010 = vmatpush1.msra.mxu0 %v987
      %1011 = vmatprep.subr.mxu0 %v986
      %1012 = vmatpush1.msra.mxu0 %v985
      %1013 = vmatprep.subr.mxu0 %v984
      %1014 = vmatpush1.msra.mxu0 %v983
      %1015 = vmatprep.subr.mxu0 %v982
      %1016 = vmatpush1.msra.mxu0 %v981
      %1017 = vmatprep.subr.mxu0 %v980
      %1018 = vmatpush1.msra.mxu0 %v979
      %1019 = vmatprep.subr.mxu0 %v978
      %1020 = vmatpush1.msra.mxu0 %v977
      %1021 = vmatprep.subr.mxu0 %v976
      %1022 = vmatpush1.msra.mxu0 %v975
      %1023 = vmatprep.subr.mxu0 %v974
      %1024 = vmatpush1.msra.mxu0 %v973
      %1025 = vmatprep.subr.mxu0 %v972
      %1026 = vmatpush1.msra.mxu0 %v971
      %1027 = vmatprep.subr.mxu0 %v970
      %1028 = vmatpush1.msra.mxu0 %v969
      %1029 = vmatprep.subr.mxu0 %v968
      %1030 = vmatpush1.msra.mxu0 %v967
      %1031 = vmatprep.subr.mxu0 %v966
      %1032 = vmatpush1.msra.mxu0 %v965
      %1033 = vmatprep.subr.mxu0 0.0
      %1034 = vmatpush2.msra.mxu0 0.0
      %1035 = vmatprep.subr.mxu0 0.0
      %1036 = vmatpush2.msra.mxu0 0.0
      %1037 = vmatprep.subr.mxu0 0.0
      %1038 = vmatpush2.msra.mxu0 0.0
      %1039 = vmatprep.subr.mxu0 0.0
      %1040 = vmatpush2.msra.mxu0 0.0
      %1041 = vmatprep.subr.mxu0 0.0
      %1042 = vmatpush2.msra.mxu0 0.0
      %1043 = vmatprep.subr.mxu0 0.0
      %1044 = vmatpush2.msra.mxu0 0.0
      %1045 = vmatprep.subr.mxu0 0.0
      %1046 = vmatpush2.msra.mxu0 0.0
      %1047 = vmatprep.subr.mxu0 0.0
      %1048 = vmatpush2.msra.mxu0 0.0
      %1049 = vmatprep.subr.mxu0 0.0
      %1050 = vmatpush2.msra.mxu0 0.0
      %1051 = vmatprep.subr.mxu0 0.0
      %1052 = vmatpush2.msra.mxu0 0.0
      %1053 = vmatprep.subr.mxu0 0.0
      %1054 = vmatpush2.msra.mxu0 0.0
      %1055 = vmatprep.subr.mxu0 0.0
      %1056 = vmatpush2.msra.mxu0 0.0
      %1057 = vmatprep.subr.mxu0 0.0
      %1058 = vmatpush2.msra.mxu0 0.0
      %1059 = vmatprep.subr.mxu0 0.0
      %1060 = vmatpush2.msra.mxu0 0.0
      %1061 = vmatprep.subr.mxu0 0.0
      %1062 = vmatpush2.msra.mxu0 0.0
      %1063 = vmatprep.subr.mxu0 0.0
      %1064 = vmatpush2.msra.mxu0 0.0
      %1065 = vmatprep.mubr.f32.mxu0 0.0
      %1066 = vmatmul.mubr.f32.gmra.mxu0 %v997
      %v1067 = vpop.f32.mrf.mxu0
      %v1068 = vadd.f32 0.0, %v1067
      %v1069 = vpop.f32.mrf.mxu0
      %v1070 = vadd.f32 0.0, %v1069
      %1071 = vmatprep.mubr.f32.mxu0 0.0
      %1072 = vmatmul.mubr.f32.gmra.mxu0 %v998
      %v1073 = vpop.f32.mrf.mxu0
      %v1074 = vadd.f32 0.0, %v1073
      %v1075 = vpop.f32.mrf.mxu0
      %v1076 = vadd.f32 0.0, %v1075
      %1077 = vmatprep.mubr.f32.mxu0 0.0
      %1078 = vmatmul.mubr.f32.gmra.mxu0 %v999
      %v1079 = vpop.f32.mrf.mxu0
      %v1080 = vadd.f32 0.0, %v1079
      %v1081 = vpop.f32.mrf.mxu0
      %v1082 = vadd.f32 0.0, %v1081
      %1083 = vmatprep.mubr.f32.mxu0 0.0
      %1084 = vmatmul.mubr.f32.gmra.mxu0 %v1000
      %v1085 = vpop.f32.mrf.mxu0
      %v1086 = vadd.f32 0.0, %v1085
      %v1087 = vpop.f32.mrf.mxu0
      %v1088 = vadd.f32 0.0, %v1087
      %1089 = vdwg.mxu0
      %1090 = vst [vmem:[%s284] sm:$0xff] %v1068
      %1091 = vst [vmem:[%s284 + $0x8] sm:$0xff] %v1070
      %1092 = vst [vmem:[%s284 + $0x10] sm:$0xff] %v1074
      %1093 = vst [vmem:[%s284 + $0x18] sm:$0xff] %v1076
      %1094 = vst [vmem:[%s284 + $0x20] sm:$0xff] %v1080
      %1095 = vst [vmem:[%s284 + $0x28] sm:$0xff] %v1082
      %1096 = vst [vmem:[%s284 + $0x30] sm:$0xff] %v1086
      %1097 = vst [vmem:[%s284 + $0x38] sm:$0xff] %v1088
      %s1098 = smul.u32 2, %s22
      %p1099 = scmp.lt.s32.totalorder %s21, 1
      %s1100 = scalar_select %p1099, %s21, 1
      %p1101 = scmp.lt.s32.totalorder %s1098, 1
      %s1102 = scalar_select %p1101, %s1098, 1
      %s1103 = smul.addr %s1100, 2
      %s1104 = sadd.s32 %s1102, %s1103
      %s1105 = scalar_lea.vmem %s4, %s1104
      %s1106 = smul.u32 2, %s22
      %p1107 = scmp.lt.s32.totalorder %s21, 1
      %s1108 = scalar_select %p1107, %s21, 1
      %p1109 = scmp.lt.s32.totalorder %s1106, 1
      %s1110 = scalar_select %p1109, %s1106, 1
      %s1111 = smul.addr %s1108, 8
      %s1112 = sadd.s32 %s1110, %s1111
      %s1113 = smul.addr %s1112, 8
      %s1114 = scalar_lea.vmem %s5, %s1113
      // Predicated region
      $region37: #{vq_forward.1} parent=35 // pred_check
        %p1115 = pneg %p140
      $region38: #{vq_forward.1} parent=35 // pred_check_branch
        %1117 = sbr.rel (%p1115) target = $region40
      $region39: #{vq_forward.1} parent=35 // pred_region
        %s1118 = smul.u32 2, %s22
      $region40: #{vq_forward.1} parent=35 // pred_fallthru
        _
      // Predicated region
      $region41: #{vq_forward.1} parent=35 // pred_check
        %p1119 = pneg %p168
      $region42: #{vq_forward.1} parent=35 // pred_check_branch
        %1121 = sbr.rel (%p1119) target = $region44
      $region43: #{vq_forward.1} parent=35 // pred_region
        %s1122 = smul.u32 2, %s22
      $region44: #{vq_forward.1} parent=35 // pred_fallthru
        _
    $region36: #{vq_forward.1} parent=5 // pred_fallthru
      _
    %p1123 = scmp.le.s32.totalorder 2, %s12
    // Predicated region
    $region45: #{vq_forward.1} parent=5 // pred_check
      %p1124 = pneg %p1123
    $region46: #{vq_forward.1} parent=5 // pred_check_branch
      %1126 = sbr.rel (%p1124) target = $region48
    $region47: #{vq_forward.1} parent=5 // pred_region
      %s1127 = ssub.s32 %s12, 2
      // Predicated region
      $region49: #{vq_forward.1} parent=47 // pred_check
        %p1128 = pneg %p146
      $region50: #{vq_forward.1} parent=47 // pred_check_branch
        %1130 = sbr.rel (%p1128) target = $region52
      $region51: #{vq_forward.1} parent=47 // pred_region
        %s1131 = smul.u32 2, %s24
        %p1132 = scmp.lt.s32.totalorder %s23, 1
        %s1133 = scalar_select %p1132, %s23, 1
        %p1134 = scmp.lt.s32.totalorder %s1131, 1
        %s1135 = scalar_select %p1134, %s1131, 1
        %s1136 = smul.addr %s1133, 2
        %s1137 = sadd.s32 %s1135, %s1136
        %s1138 = scalar_lea.vmem %s4, %s1137
      $region52: #{vq_forward.1} parent=47 // pred_fallthru
        _
      // Predicated region
      $region53: #{vq_forward.1} parent=47 // pred_check
        %p1139 = pneg %p174
      $region54: #{vq_forward.1} parent=47 // pred_check_branch
        %1141 = sbr.rel (%p1139) target = $region56
      $region55: #{vq_forward.1} parent=47 // pred_region
        %s1142 = smul.u32 2, %s24
        %p1143 = scmp.lt.s32.totalorder %s23, 1
        %s1144 = scalar_select %p1143, %s23, 1
        %p1145 = scmp.lt.s32.totalorder %s1142, 1
        %s1146 = scalar_select %p1145, %s1142, 1
        %s1147 = smul.addr %s1144, 8
        %s1148 = sadd.s32 %s1146, %s1147
        %s1149 = smul.addr %s1148, 8
        %s1150 = scalar_lea.vmem %s5, %s1149
      $region56: #{vq_forward.1} parent=47 // pred_fallthru
        _
    $region48: #{vq_forward.1} parent=5 // pred_fallthru
      _
  $region6: #{vq_forward.1} parent=0 // loop_footer
    %s16 = sadd.s32 1, %s12
  $region7: #{vq_forward.1} parent=0 // loop_footer_branch
    %11 = sbr.rel target = $region3
  $region8: #{vq_forward.1} parent=0 // loop_exit
    _

</llo_original>
